<compile_context>
chip_gen: v6e
topology: v6e:2x2x1
jax: 0.10.0
libtpu: 0.0.40
codegen_flags: <defaults>
</compile_context>

<pallas_src>
import jax
import jax.numpy as jnp
from jax.experimental import pallas as pl
from jax.experimental.pallas import tpu as pltpu

BN_EPS = 1e-5
VMEM_LIMIT = 48 * 1024 * 1024          # under v7x's 64 MiB physical; ample on v5e/v6e
TILE_BYTES = 4 * 1024 * 1024           # target (4, TR, Cin) f32 tile per pipeline buffer
MAX_TILE_ROWS = 2048


def _round_up(x, m):
    return (x + m - 1) // m * m


def _choose_row_tile(rows, cin):
    """Row tile for the (4, TR, Cin) f32 activation block: as large as possible
    under TILE_BYTES per buffer (BlockSpec double-buffers it), a multiple of 8,
    capped at MAX_TILE_ROWS.  The grid uses pl.cdiv, so TR need not divide rows."""
    cap = max(8, (TILE_BYTES // (4 * cin * 4)) // 8 * 8)
    return min(MAX_TILE_ROWS, cap, _round_up(rows, 8))


def _apply_kernel(x_ref, scale_ref, shift_ref, w_ref, b_ref, out_ref):
    """BN-affine + ReLU + 2x2 avg-pool (slab adds) + 1x1 conv (MXU matmul).

    x_ref:       (4, TR, Cin)  four pooling planes, channels-last
    scale/shift: (1, Cin)      BN affine folded with batch statistics
    w_ref:       (Cin, Cop)    conv weight^T with the 0.25 pool norm folded in
    b_ref:       (1, Cop)
    out_ref:     (TR, Cop)
    """
    tr, c = x_ref.shape[1], x_ref.shape[2]
    # Hoist the scale/shift broadcasts out of the 4-plane loop (no CSE of
    # broadcast_in_dim in JAX).
    scale = jnp.broadcast_to(scale_ref[...], (tr, c))
    shift = jnp.broadcast_to(shift_ref[...], (tr, c))

    acc = jnp.maximum(x_ref[0].astype(jnp.float32) * scale + shift, 0.0)
    for p in range(1, 4):                      # static unroll over pooling planes
        acc = acc + jnp.maximum(x_ref[p].astype(jnp.float32) * scale + shift, 0.0)

    # The 0.25 pool normalization is pre-folded into w in the wrapper, so `acc`
    # feeds the matmul directly.  Matmul stays f32 to hold the 1e-4 tolerance;
    # bf16 operands are only worth it if the matmul ever becomes compute-bound.
    z = jnp.dot(acc, w_ref[...], preferred_element_type=jnp.float32) + b_ref[...]
    out_ref[...] = z.astype(out_ref.dtype)


def transition_block(x_nchw, gamma, beta, conv_w, conv_b):
    """x_nchw: (N, Cin, H, W) -> (N, Cout, H//2, W//2), training-mode BN."""
    N, C, H, W = x_nchw.shape
    Co = conv_w.shape[0]
    assert H % 2 == 0 and W % 2 == 0, "AvgPool2d(2) path assumes even H, W"
    Ho, Wo = H // 2, W // 2
    R = N * Ho * Wo

    xf = x_nchw.astype(jnp.float32)

    # ---- BN batch statistics: one fused XLA sweep over x (no dedicated Pallas
    # stats read of the activation).  Shifted one-pass moments (pivot = a
    # per-channel sample) avoid E[x^2]-mean^2 cancellation while staying
    # single-pass; `count` uses the true element count. ----
    count = jnp.float32(N * H * W)
    pivot = xf[:1, :, :1, :1]                            # (1, C, 1, 1)
    xc = xf - pivot                                      # fuses into the reductions
    s = jnp.sum(xc, axis=(0, 2, 3))                      # (C,)
    q = jnp.sum(xc * xc, axis=(0, 2, 3))                 # (C,)
    mean_c = s / count
    var = jnp.maximum(q / count - mean_c * mean_c, 0.0)  # biased (training) var
    mean = pivot.reshape(C) + mean_c
    scale_v = gamma.astype(jnp.float32) * jax.lax.rsqrt(var + BN_EPS)
    shift_v = beta.astype(jnp.float32) - mean * scale_v
    scale = scale_v.reshape(1, C)
    shift = shift_v.reshape(1, C)

    # ---- Layout glue (single XLA transpose): the 4 pixels of every 2x2 pooling
    # window become 4 channels-last planes, so in-kernel pooling is slab adds:
    #   x4[p, (n*Ho+ho)*Wo+wo, c] = x[n, c, 2*ho + p//2, 2*wo + p%2]
    # TODO(synk): accept NHWC input (or emit NHWC upstream) to drop this
    # full-activation HBM round trip entirely.
    x4 = jnp.transpose(xf.reshape(N, C, Ho, 2, Wo, 2),
                       (3, 5, 0, 2, 4, 1)).reshape(4, R, C)

    # Lane-dense output padding only when it is cheap; tiny Cout keeps its true
    # width (masked stores beat large HBM write amplification).
    Cop = _round_up(Co, 128)
    if Cop > 2 * Co:
        Cop = Co

    # 1x1 conv weight transposed to (Cin, Cop); fold the 2x2 avg-pool's 0.25.
    w_t = conv_w.reshape(Co, C).T.astype(jnp.float32) * 0.25
    b_row = conv_b.reshape(1, Co).astype(jnp.float32)
    if Cop != Co:
        w_t = jnp.zeros((C, Cop), jnp.float32).at[:, :Co].set(w_t)
        b_row = jnp.zeros((1, Cop), jnp.float32).at[:, :Co].set(b_row)

    TR = _choose_row_tile(R, C)
    n_tiles = pl.cdiv(R, TR)

    # ---- BN-apply + ReLU + pool + 1x1 conv: row-tiled, double-buffered by
    # BlockSpec, 'parallel' row axis (megacore split on v7x). ----
    # Note: w/b/scale/shift have constant block indices; pipeline_mode=
    # pl.Buffered(1) on their specs would halve their VMEM footprint on v7x if
    # VMEM ever gets tight (current budget is well under the limit).
    out_flat = pl.pallas_call(
        _apply_kernel,
        out_shape=jax.ShapeDtypeStruct((R, Cop), jnp.float32),
        grid=(n_tiles,),
        in_specs=[
            pl.BlockSpec((4, TR, C), lambda i: (0, i, 0)),
            pl.BlockSpec((1, C), lambda i: (0, 0)),
            pl.BlockSpec((1, C), lambda i: (0, 0)),
            pl.BlockSpec((C, Cop), lambda i: (0, 0)),
            pl.BlockSpec((1, Cop), lambda i: (0, 0)),
        ],
        out_specs=pl.BlockSpec((TR, Cop), lambda i: (i, 0)),
        compiler_params=pltpu.CompilerParams(
            dimension_semantics=("parallel",),
            vmem_limit_bytes=VMEM_LIMIT),
    )(x4, scale, shift, w_t, b_row)

    out = out_flat if Cop == Co else out_flat[:, :Co]
    out = out.reshape(N, Ho, Wo, Co)
    # TODO(synk): return NHWC directly (skip this transpose) if the consumer allows.
    return jnp.transpose(out, (0, 3, 1, 2))


def reference(x, gamma, beta, conv_w, conv_b):
    """Pure-JAX reference matching the PyTorch forward (training-mode BN)."""
    mean = x.mean(axis=(0, 2, 3), keepdims=True)
    var = ((x - mean) ** 2).mean(axis=(0, 2, 3), keepdims=True)
    y = (x - mean) / jnp.sqrt(var + BN_EPS) * gamma.reshape(1, -1, 1, 1) \
        + beta.reshape(1, -1, 1, 1)
    y = jnp.maximum(y, 0.0)
    z = jnp.einsum('nchw,oc->nohw', y, conv_w.reshape(conv_w.shape[0], -1)) \
        + conv_b.reshape(1, -1, 1, 1)
    N, Co, H, W = z.shape
    return z.reshape(N, Co, H // 2, 2, W // 2, 2).mean(axis=(3, 5))


if __name__ == "__main__":
    key = jax.random.PRNGKey(0)
    k_x, k_w, k_b = jax.random.split(key, 3)

    N, Cin, H, W = 2, 4, 16, 16
    Cout = 2

    x = jax.random.normal(k_x, (N, Cin, H, W), dtype=jnp.float32)
    gamma = jnp.ones((Cin,), dtype=jnp.float32)        # PyTorch BN defaults
    beta = jnp.zeros((Cin,), dtype=jnp.float32)
    conv_w = jax.random.normal(k_w, (Cout, Cin, 1, 1), dtype=jnp.float32) * 0.5
    conv_b = jax.random.normal(k_b, (Cout,), dtype=jnp.float32) * 0.1

    out = jax.block_until_ready(transition_block(x, gamma, beta, conv_w, conv_b))
    ref = reference(x, gamma, beta, conv_w, conv_b)

    assert out.shape == (N, Cout, H // 2, W // 2), out.shape
    assert jnp.allclose(out, ref, atol=1e-4, rtol=1e-4), \
        float(jnp.max(jnp.abs(out - ref)))
    print("KERNEL_OK")
</pallas_src>

<mosaic_0001>
module attributes {stable_mosaic.version = 11 : i64} {
  func.func @_apply_kernel(%arg0: i32, %arg1: memref<4x128x4xf32, #tpu.memory_space<vmem>>, %arg2: memref<1x4xf32, #tpu.memory_space<vmem>>, %arg3: memref<1x4xf32, #tpu.memory_space<vmem>>, %arg4: memref<4x2xf32, #tpu.memory_space<vmem>>, %arg5: memref<1x2xf32, #tpu.memory_space<vmem>>, %arg6: memref<128x2xf32, #tpu.memory_space<vmem>>) attributes {dimension_semantics = [#tpu.dimension_semantics<parallel>], iteration_bounds = array<i64: 1>, scalar_prefetch = 0 : i64, scratch_operands = 0 : i64, tpu.core_type = #tpu.core_type<tc>, window_params = [{transform_indices = @transform_0, window_bounds = array<i64: 4, 128, 4>}, {pipeline_mode = #tpu.pipeline_mode<synchronous>, transform_indices = @transform_1, window_bounds = array<i64: 1, 4>}, {pipeline_mode = #tpu.pipeline_mode<synchronous>, transform_indices = @transform_2, window_bounds = array<i64: 1, 4>}, {pipeline_mode = #tpu.pipeline_mode<synchronous>, transform_indices = @transform_3, window_bounds = array<i64: 4, 2>}, {pipeline_mode = #tpu.pipeline_mode<synchronous>, transform_indices = @transform_4, window_bounds = array<i64: 1, 2>}, {transform_indices = @transform_5, window_bounds = array<i64: 128, 2>}]} {
    %c0 = arith.constant 0 : index
    %c0_0 = arith.constant 0 : index
    %0 = vector.load %arg2[%c0, %c0_0] : memref<1x4xf32, #tpu.memory_space<vmem>>, vector<1x4xf32>
    %1 = vector.shape_cast %0 : vector<1x4xf32> to vector<1x4xf32>
    %2 = vector.broadcast %1 : vector<1x4xf32> to vector<128x4xf32>
    %c0_1 = arith.constant 0 : index
    %c0_2 = arith.constant 0 : index
    %3 = vector.load %arg3[%c0_1, %c0_2] : memref<1x4xf32, #tpu.memory_space<vmem>>, vector<1x4xf32>
    %4 = vector.shape_cast %3 : vector<1x4xf32> to vector<1x4xf32>
    %5 = vector.broadcast %4 : vector<1x4xf32> to vector<128x4xf32>
    %c0_3 = arith.constant 0 : index
    %c0_4 = arith.constant 0 : index
    %c0_5 = arith.constant 0 : index
    %6 = vector.load %arg1[%c0_3, %c0_4, %c0_5] : memref<4x128x4xf32, #tpu.memory_space<vmem>>, vector<1x128x4xf32>
    %7 = vector.shape_cast %6 : vector<1x128x4xf32> to vector<128x4xf32>
    %8 = arith.mulf %7, %2 : vector<128x4xf32>
    %9 = arith.addf %8, %5 : vector<128x4xf32>
    %cst = arith.constant 0.000000e+00 : f32
    %10 = vector.broadcast %cst : f32 to vector<128x4xf32>
    %11 = arith.maximumf %9, %10 : vector<128x4xf32>
    %c1 = arith.constant 1 : index
    %c0_6 = arith.constant 0 : index
    %c0_7 = arith.constant 0 : index
    %12 = vector.load %arg1[%c1, %c0_6, %c0_7] : memref<4x128x4xf32, #tpu.memory_space<vmem>>, vector<1x128x4xf32>
    %13 = vector.shape_cast %12 : vector<1x128x4xf32> to vector<128x4xf32>
    %14 = arith.mulf %13, %2 : vector<128x4xf32>
    %15 = arith.addf %14, %5 : vector<128x4xf32>
    %cst_8 = arith.constant 0.000000e+00 : f32
    %16 = vector.broadcast %cst_8 : f32 to vector<128x4xf32>
    %17 = arith.maximumf %15, %16 : vector<128x4xf32>
    %18 = arith.addf %11, %17 : vector<128x4xf32>
    %c2 = arith.constant 2 : index
    %c0_9 = arith.constant 0 : index
    %c0_10 = arith.constant 0 : index
    %19 = vector.load %arg1[%c2, %c0_9, %c0_10] : memref<4x128x4xf32, #tpu.memory_space<vmem>>, vector<1x128x4xf32>
    %20 = vector.shape_cast %19 : vector<1x128x4xf32> to vector<128x4xf32>
    %21 = arith.mulf %20, %2 : vector<128x4xf32>
    %22 = arith.addf %21, %5 : vector<128x4xf32>
    %cst_11 = arith.constant 0.000000e+00 : f32
    %23 = vector.broadcast %cst_11 : f32 to vector<128x4xf32>
    %24 = arith.maximumf %22, %23 : vector<128x4xf32>
    %25 = arith.addf %18, %24 : vector<128x4xf32>
    %c3 = arith.constant 3 : index
    %c0_12 = arith.constant 0 : index
    %c0_13 = arith.constant 0 : index
    %26 = vector.load %arg1[%c3, %c0_12, %c0_13] : memref<4x128x4xf32, #tpu.memory_space<vmem>>, vector<1x128x4xf32>
    %27 = vector.shape_cast %26 : vector<1x128x4xf32> to vector<128x4xf32>
    %28 = arith.mulf %27, %2 : vector<128x4xf32>
    %29 = arith.addf %28, %5 : vector<128x4xf32>
    %cst_14 = arith.constant 0.000000e+00 : f32
    %30 = vector.broadcast %cst_14 : f32 to vector<128x4xf32>
    %31 = arith.maximumf %29, %30 : vector<128x4xf32>
    %32 = arith.addf %25, %31 : vector<128x4xf32>
    %c0_15 = arith.constant 0 : index
    %c0_16 = arith.constant 0 : index
    %33 = vector.load %arg4[%c0_15, %c0_16] : memref<4x2xf32, #tpu.memory_space<vmem>>, vector<4x2xf32>
    %cst_17 = arith.constant dense<0.000000e+00> : vector<128x2xf32>
    %34 = tpu.matmul %32, %33, %cst_17 {dimension_numbers = #tpu.dot_dimension_numbers<[1], [0], [0], [1], [0, 0, 1, 1], [], []>} : vector<128x4xf32>, vector<4x2xf32>, vector<128x2xf32> -> vector<128x2xf32>
    %c0_18 = arith.constant 0 : index
    %c0_19 = arith.constant 0 : index
    %35 = vector.load %arg5[%c0_18, %c0_19] : memref<1x2xf32, #tpu.memory_space<vmem>>, vector<1x2xf32>
    %36 = vector.broadcast %35 : vector<1x2xf32> to vector<128x2xf32>
    %37 = arith.addf %34, %36 : vector<128x2xf32>
    %c0_20 = arith.constant 0 : index
    %c0_21 = arith.constant 0 : index
    %38 = vector.load %arg6[%c0_20, %c0_21] : memref<128x2xf32, #tpu.memory_space<vmem>>, vector<128x2xf32>
    tpu.vector_store %arg6[%c0_20, %c0_21], %37 {strides = array<i32>} : memref<128x2xf32, #tpu.memory_space<vmem>>, vector<128x2xf32>,
    return
  }
  func.func @transform_0(%arg0: i32) -> (i32, i32, i32) {
    %c0_i32 = arith.constant 0 : i32
    %c0_i32_0 = arith.constant 0 : i32
    %c0_i32_1 = arith.constant 0 : i32
    return %c0_i32, %arg0, %c0_i32_0 : i32, i32, i32
  }
  func.func @transform_1(%arg0: i32) -> (i32, i32) {
    %c0_i32 = arith.constant 0 : i32
    %c0_i32_0 = arith.constant 0 : i32
    %c0_i32_1 = arith.constant 0 : i32
    return %c0_i32, %c0_i32_0 : i32, i32
  }
  func.func @transform_2(%arg0: i32) -> (i32, i32) {
    %c0_i32 = arith.constant 0 : i32
    %c0_i32_0 = arith.constant 0 : i32
    %c0_i32_1 = arith.constant 0 : i32
    return %c0_i32, %c0_i32_0 : i32, i32
  }
  func.func @transform_3(%arg0: i32) -> (i32, i32) {
    %c0_i32 = arith.constant 0 : i32
    %c0_i32_0 = arith.constant 0 : i32
    %c0_i32_1 = arith.constant 0 : i32
    return %c0_i32, %c0_i32_0 : i32, i32
  }
  func.func @transform_4(%arg0: i32) -> (i32, i32) {
    %c0_i32 = arith.constant 0 : i32
    %c0_i32_0 = arith.constant 0 : i32
    %c0_i32_1 = arith.constant 0 : i32
    return %c0_i32, %c0_i32_0 : i32, i32
  }
  func.func @transform_5(%arg0: i32) -> (i32, i32) {
    %c0_i32 = arith.constant 0 : i32
    %c0_i32_0 = arith.constant 0 : i32
    return %arg0, %c0_i32 : i32, i32
  }
}

</mosaic_0001>

<llo_original>
// kernel: tpu_custom_call.1
$region0: #{tpu_custom_call.1}
  #allocation0 [shape = 'u32[]', space=smem, size = 0x4, offset = 0x4, fixed_abs, tag = 'smem constant byte address 0x4 - core index']
  #allocation1 [shape = 'u32[144,128]{1,0:T(1,128)}', space=vmem, size = 0x12000, scoped, tag = 'internal scratch']
  %s0 = inlined_call_operand.vmem [shape: f32[4,128,4], index: 0, kind: input, shape index: {}]
  %s1 = inlined_call_operand.vmem [shape: f32[1,4], index: 1, kind: input, shape index: {}]
  %s2 = inlined_call_operand.vmem [shape: f32[1,4], index: 2, kind: input, shape index: {}]
  %s3 = inlined_call_operand.vmem [shape: f32[4,2], index: 3, kind: input, shape index: {}]
  %s4 = inlined_call_operand.vmem [shape: f32[1,2], index: 4, kind: input, shape index: {}]
  %s5 = inlined_call_operand.vmem [shape: f32[128,2], index: 5, kind: output, shape index: {}]
  %s6 = sld [smem:[#allocation0]]
  $region30: #{tpu_custom_call.1} parent=0
    _
  %s8 = ssub.s32 1, %s6
  %s9 = scalar_select 0, %s8, %s6
  // Predicated region
  $region2: #{tpu_custom_call.1} parent=0 // pred_check
    _
  $region3: #{tpu_custom_call.1} parent=0 // pred_check_branch
    %11 = sbr.rel (0) target = $region5
  $region4: #{tpu_custom_call.1} parent=0 // pred_region
    _
  $region5: #{tpu_custom_call.1} parent=0 // pred_fallthru
    _
  // Predicated region
  $region6: #{tpu_custom_call.1} parent=0 // pred_check
    _
  $region7: #{tpu_custom_call.1} parent=0 // pred_check_branch
    %13 = sbr.rel (0) target = $region9
  $region8: #{tpu_custom_call.1} parent=0 // pred_region
    _
  $region9: #{tpu_custom_call.1} parent=0 // pred_fallthru
    _
  // Predicated region
  $region10: #{tpu_custom_call.1} parent=0 // pred_check
    _
  $region11: #{tpu_custom_call.1} parent=0 // pred_check_branch
    %15 = sbr.rel (0) target = $region13
  $region12: #{tpu_custom_call.1} parent=0 // pred_region
    _
  $region13: #{tpu_custom_call.1} parent=0 // pred_fallthru
    _
  // Predicated region
  $region14: #{tpu_custom_call.1} parent=0 // pred_check
    _
  $region15: #{tpu_custom_call.1} parent=0 // pred_check_branch
    %17 = sbr.rel (0) target = $region17
  $region16: #{tpu_custom_call.1} parent=0 // pred_region
    _
  $region17: #{tpu_custom_call.1} parent=0 // pred_fallthru
    _
  // Predicated region
  $region18: #{tpu_custom_call.1} parent=0 // pred_check
    _
  $region19: #{tpu_custom_call.1} parent=0 // pred_check_branch
    %19 = sbr.rel (0) target = $region21
  $region20: #{tpu_custom_call.1} parent=0 // pred_region
    _
  $region21: #{tpu_custom_call.1} parent=0 // pred_fallthru
    _
  %v20 = vld [vmem:[%s1] sm:$0x1]
  %v22 = vlaneseq
  %v23 = vshrl.u32 %v22, 7
  %v24 = vsub.s32 0, %v23
  %v25 = vrot.slane %v20, %v24
  %v27 = vld [vmem:[%s2] sm:$0x1]
  %v29 = vlaneseq
  %v30 = vshrl.u32 %v29, 7
  %v31 = vsub.s32 0, %v30
  %v32 = vrot.slane %v27, %v31
  %v34 = vld [vmem:[%s0] sm:$0xff]
  %v35 = vld [vmem:[%s0 + $0x8] sm:$0xff]
  %v36 = vld [vmem:[%s0 + $0x10] sm:$0xff]
  %v37 = vld [vmem:[%s0 + $0x18] sm:$0xff]
  %v38 = vld [vmem:[%s0 + $0x20] sm:$0xff]
  %v39 = vld [vmem:[%s0 + $0x28] sm:$0xff]
  %v40 = vld [vmem:[%s0 + $0x30] sm:$0xff]
  %v41 = vld [vmem:[%s0 + $0x38] sm:$0xff]
  %v42 = vld [vmem:[%s0 + $0x40] sm:$0xff]
  %v43 = vld [vmem:[%s0 + $0x48] sm:$0xff]
  %v44 = vld [vmem:[%s0 + $0x50] sm:$0xff]
  %v45 = vld [vmem:[%s0 + $0x58] sm:$0xff]
  %v46 = vld [vmem:[%s0 + $0x60] sm:$0xff]
  %v47 = vld [vmem:[%s0 + $0x68] sm:$0xff]
  %v48 = vld [vmem:[%s0 + $0x70] sm:$0xff]
  %v49 = vld [vmem:[%s0 + $0x78] sm:$0xff]
  %v50 = vmul.f32 %v34, %v25
  %v51 = vmul.f32 %v35, %v25
  %v52 = vmul.f32 %v36, %v25
  %v53 = vmul.f32 %v37, %v25
  %v54 = vmul.f32 %v38, %v25
  %v55 = vmul.f32 %v39, %v25
  %v56 = vmul.f32 %v40, %v25
  %v57 = vmul.f32 %v41, %v25
  %v58 = vmul.f32 %v42, %v25
  %v59 = vmul.f32 %v43, %v25
  %v60 = vmul.f32 %v44, %v25
  %v61 = vmul.f32 %v45, %v25
  %v62 = vmul.f32 %v46, %v25
  %v63 = vmul.f32 %v47, %v25
  %v64 = vmul.f32 %v48, %v25
  %v65 = vmul.f32 %v49, %v25
  %v66 = vadd.f32 %v50, %v32
  %v67 = vadd.f32 %v51, %v32
  %v68 = vadd.f32 %v52, %v32
  %v69 = vadd.f32 %v53, %v32
  %v70 = vadd.f32 %v54, %v32
  %v71 = vadd.f32 %v55, %v32
  %v72 = vadd.f32 %v56, %v32
  %v73 = vadd.f32 %v57, %v32
  %v74 = vadd.f32 %v58, %v32
  %v75 = vadd.f32 %v59, %v32
  %v76 = vadd.f32 %v60, %v32
  %v77 = vadd.f32 %v61, %v32
  %v78 = vadd.f32 %v62, %v32
  %v79 = vadd.f32 %v63, %v32
  %v80 = vadd.f32 %v64, %v32
  %v81 = vadd.f32 %v65, %v32
  %v82 = vmax.f32 %v66, 0.0
  %v83 = vmax.f32 %v67, 0.0
  %v84 = vmax.f32 %v68, 0.0
  %v85 = vmax.f32 %v69, 0.0
  %v86 = vmax.f32 %v70, 0.0
  %v87 = vmax.f32 %v71, 0.0
  %v88 = vmax.f32 %v72, 0.0
  %v89 = vmax.f32 %v73, 0.0
  %v90 = vmax.f32 %v74, 0.0
  %v91 = vmax.f32 %v75, 0.0
  %v92 = vmax.f32 %v76, 0.0
  %v93 = vmax.f32 %v77, 0.0
  %v94 = vmax.f32 %v78, 0.0
  %v95 = vmax.f32 %v79, 0.0
  %v96 = vmax.f32 %v80, 0.0
  %v97 = vmax.f32 %v81, 0.0
  %s98 = scalar_lea.vmem %s0, 128
  %v99 = vld [vmem:[%s98] sm:$0xff]
  %v100 = vld [vmem:[%s98 + $0x8] sm:$0xff]
  %v101 = vld [vmem:[%s98 + $0x10] sm:$0xff]
  %v102 = vld [vmem:[%s98 + $0x18] sm:$0xff]
  %v103 = vld [vmem:[%s98 + $0x20] sm:$0xff]
  %v104 = vld [vmem:[%s98 + $0x28] sm:$0xff]
  %v105 = vld [vmem:[%s98 + $0x30] sm:$0xff]
  %v106 = vld [vmem:[%s98 + $0x38] sm:$0xff]
  %v107 = vld [vmem:[%s98 + $0x40] sm:$0xff]
  %v108 = vld [vmem:[%s98 + $0x48] sm:$0xff]
  %v109 = vld [vmem:[%s98 + $0x50] sm:$0xff]
  %v110 = vld [vmem:[%s98 + $0x58] sm:$0xff]
  %v111 = vld [vmem:[%s98 + $0x60] sm:$0xff]
  %v112 = vld [vmem:[%s98 + $0x68] sm:$0xff]
  %v113 = vld [vmem:[%s98 + $0x70] sm:$0xff]
  %v114 = vld [vmem:[%s98 + $0x78] sm:$0xff]
  %v115 = vmul.f32 %v99, %v25
  %v116 = vmul.f32 %v100, %v25
  %v117 = vmul.f32 %v101, %v25
  %v118 = vmul.f32 %v102, %v25
  %v119 = vmul.f32 %v103, %v25
  %v120 = vmul.f32 %v104, %v25
  %v121 = vmul.f32 %v105, %v25
  %v122 = vmul.f32 %v106, %v25
  %v123 = vmul.f32 %v107, %v25
  %v124 = vmul.f32 %v108, %v25
  %v125 = vmul.f32 %v109, %v25
  %v126 = vmul.f32 %v110, %v25
  %v127 = vmul.f32 %v111, %v25
  %v128 = vmul.f32 %v112, %v25
  %v129 = vmul.f32 %v113, %v25
  %v130 = vmul.f32 %v114, %v25
  %v131 = vadd.f32 %v115, %v32
  %v132 = vadd.f32 %v116, %v32
  %v133 = vadd.f32 %v117, %v32
  %v134 = vadd.f32 %v118, %v32
  %v135 = vadd.f32 %v119, %v32
  %v136 = vadd.f32 %v120, %v32
  %v137 = vadd.f32 %v121, %v32
  %v138 = vadd.f32 %v122, %v32
  %v139 = vadd.f32 %v123, %v32
  %v140 = vadd.f32 %v124, %v32
  %v141 = vadd.f32 %v125, %v32
  %v142 = vadd.f32 %v126, %v32
  %v143 = vadd.f32 %v127, %v32
  %v144 = vadd.f32 %v128, %v32
  %v145 = vadd.f32 %v129, %v32
  %v146 = vadd.f32 %v130, %v32
  %v147 = vmax.f32 %v131, 0.0
  %v148 = vmax.f32 %v132, 0.0
  %v149 = vmax.f32 %v133, 0.0
  %v150 = vmax.f32 %v134, 0.0
  %v151 = vmax.f32 %v135, 0.0
  %v152 = vmax.f32 %v136, 0.0
  %v153 = vmax.f32 %v137, 0.0
  %v154 = vmax.f32 %v138, 0.0
  %v155 = vmax.f32 %v139, 0.0
  %v156 = vmax.f32 %v140, 0.0
  %v157 = vmax.f32 %v141, 0.0
  %v158 = vmax.f32 %v142, 0.0
  %v159 = vmax.f32 %v143, 0.0
  %v160 = vmax.f32 %v144, 0.0
  %v161 = vmax.f32 %v145, 0.0
  %v162 = vmax.f32 %v146, 0.0
  %v163 = vadd.f32 %v82, %v147
  %v164 = vadd.f32 %v83, %v148
  %v165 = vadd.f32 %v84, %v149
  %v166 = vadd.f32 %v85, %v150
  %v167 = vadd.f32 %v86, %v151
  %v168 = vadd.f32 %v87, %v152
  %v169 = vadd.f32 %v88, %v153
  %v170 = vadd.f32 %v89, %v154
  %v171 = vadd.f32 %v90, %v155
  %v172 = vadd.f32 %v91, %v156
  %v173 = vadd.f32 %v92, %v157
  %v174 = vadd.f32 %v93, %v158
  %v175 = vadd.f32 %v94, %v159
  %v176 = vadd.f32 %v95, %v160
  %v177 = vadd.f32 %v96, %v161
  %v178 = vadd.f32 %v97, %v162
  %s179 = scalar_lea.vmem %s0, 256
  %v180 = vld [vmem:[%s179] sm:$0xff]
  %v181 = vld [vmem:[%s179 + $0x8] sm:$0xff]
  %v182 = vld [vmem:[%s179 + $0x10] sm:$0xff]
  %v183 = vld [vmem:[%s179 + $0x18] sm:$0xff]
  %v184 = vld [vmem:[%s179 + $0x20] sm:$0xff]
  %v185 = vld [vmem:[%s179 + $0x28] sm:$0xff]
  %v186 = vld [vmem:[%s179 + $0x30] sm:$0xff]
  %v187 = vld [vmem:[%s179 + $0x38] sm:$0xff]
  %v188 = vld [vmem:[%s179 + $0x40] sm:$0xff]
  %v189 = vld [vmem:[%s179 + $0x48] sm:$0xff]
  %v190 = vld [vmem:[%s179 + $0x50] sm:$0xff]
  %v191 = vld [vmem:[%s179 + $0x58] sm:$0xff]
  %v192 = vld [vmem:[%s179 + $0x60] sm:$0xff]
  %v193 = vld [vmem:[%s179 + $0x68] sm:$0xff]
  %v194 = vld [vmem:[%s179 + $0x70] sm:$0xff]
  %v195 = vld [vmem:[%s179 + $0x78] sm:$0xff]
  %v196 = vmul.f32 %v180, %v25
  %v197 = vmul.f32 %v181, %v25
  %v198 = vmul.f32 %v182, %v25
  %v199 = vmul.f32 %v183, %v25
  %v200 = vmul.f32 %v184, %v25
  %v201 = vmul.f32 %v185, %v25
  %v202 = vmul.f32 %v186, %v25
  %v203 = vmul.f32 %v187, %v25
  %v204 = vmul.f32 %v188, %v25
  %v205 = vmul.f32 %v189, %v25
  %v206 = vmul.f32 %v190, %v25
  %v207 = vmul.f32 %v191, %v25
  %v208 = vmul.f32 %v192, %v25
  %v209 = vmul.f32 %v193, %v25
  %v210 = vmul.f32 %v194, %v25
  %v211 = vmul.f32 %v195, %v25
  %v212 = vadd.f32 %v196, %v32
  %v213 = vadd.f32 %v197, %v32
  %v214 = vadd.f32 %v198, %v32
  %v215 = vadd.f32 %v199, %v32
  %v216 = vadd.f32 %v200, %v32
  %v217 = vadd.f32 %v201, %v32
  %v218 = vadd.f32 %v202, %v32
  %v219 = vadd.f32 %v203, %v32
  %v220 = vadd.f32 %v204, %v32
  %v221 = vadd.f32 %v205, %v32
  %v222 = vadd.f32 %v206, %v32
  %v223 = vadd.f32 %v207, %v32
  %v224 = vadd.f32 %v208, %v32
  %v225 = vadd.f32 %v209, %v32
  %v226 = vadd.f32 %v210, %v32
  %v227 = vadd.f32 %v211, %v32
  %v228 = vmax.f32 %v212, 0.0
  %v229 = vmax.f32 %v213, 0.0
  %v230 = vmax.f32 %v214, 0.0
  %v231 = vmax.f32 %v215, 0.0
  %v232 = vmax.f32 %v216, 0.0
  %v233 = vmax.f32 %v217, 0.0
  %v234 = vmax.f32 %v218, 0.0
  %v235 = vmax.f32 %v219, 0.0
  %v236 = vmax.f32 %v220, 0.0
  %v237 = vmax.f32 %v221, 0.0
  %v238 = vmax.f32 %v222, 0.0
  %v239 = vmax.f32 %v223, 0.0
  %v240 = vmax.f32 %v224, 0.0
  %v241 = vmax.f32 %v225, 0.0
  %v242 = vmax.f32 %v226, 0.0
  %v243 = vmax.f32 %v227, 0.0
  %v244 = vadd.f32 %v163, %v228
  %v245 = vadd.f32 %v164, %v229
  %v246 = vadd.f32 %v165, %v230
  %v247 = vadd.f32 %v166, %v231
  %v248 = vadd.f32 %v167, %v232
  %v249 = vadd.f32 %v168, %v233
  %v250 = vadd.f32 %v169, %v234
  %v251 = vadd.f32 %v170, %v235
  %v252 = vadd.f32 %v171, %v236
  %v253 = vadd.f32 %v172, %v237
  %v254 = vadd.f32 %v173, %v238
  %v255 = vadd.f32 %v174, %v239
  %v256 = vadd.f32 %v175, %v240
  %v257 = vadd.f32 %v176, %v241
  %v258 = vadd.f32 %v177, %v242
  %v259 = vadd.f32 %v178, %v243
  %s260 = scalar_lea.vmem %s0, 384
  %v261 = vld [vmem:[%s260] sm:$0xff]
  %v262 = vld [vmem:[%s260 + $0x8] sm:$0xff]
  %v263 = vld [vmem:[%s260 + $0x10] sm:$0xff]
  %v264 = vld [vmem:[%s260 + $0x18] sm:$0xff]
  %v265 = vld [vmem:[%s260 + $0x20] sm:$0xff]
  %v266 = vld [vmem:[%s260 + $0x28] sm:$0xff]
  %v267 = vld [vmem:[%s260 + $0x30] sm:$0xff]
  %v268 = vld [vmem:[%s260 + $0x38] sm:$0xff]
  %v269 = vld [vmem:[%s260 + $0x40] sm:$0xff]
  %v270 = vld [vmem:[%s260 + $0x48] sm:$0xff]
  %v271 = vld [vmem:[%s260 + $0x50] sm:$0xff]
  %v272 = vld [vmem:[%s260 + $0x58] sm:$0xff]
  %v273 = vld [vmem:[%s260 + $0x60] sm:$0xff]
  %v274 = vld [vmem:[%s260 + $0x68] sm:$0xff]
  %v275 = vld [vmem:[%s260 + $0x70] sm:$0xff]
  %v276 = vld [vmem:[%s260 + $0x78] sm:$0xff]
  %v277 = vmul.f32 %v261, %v25
  %v278 = vmul.f32 %v262, %v25
  %v279 = vmul.f32 %v263, %v25
  %v280 = vmul.f32 %v264, %v25
  %v281 = vmul.f32 %v265, %v25
  %v282 = vmul.f32 %v266, %v25
  %v283 = vmul.f32 %v267, %v25
  %v284 = vmul.f32 %v268, %v25
  %v285 = vmul.f32 %v269, %v25
  %v286 = vmul.f32 %v270, %v25
  %v287 = vmul.f32 %v271, %v25
  %v288 = vmul.f32 %v272, %v25
  %v289 = vmul.f32 %v273, %v25
  %v290 = vmul.f32 %v274, %v25
  %v291 = vmul.f32 %v275, %v25
  %v292 = vmul.f32 %v276, %v25
  %v293 = vadd.f32 %v277, %v32
  %v294 = vadd.f32 %v278, %v32
  %v295 = vadd.f32 %v279, %v32
  %v296 = vadd.f32 %v280, %v32
  %v297 = vadd.f32 %v281, %v32
  %v298 = vadd.f32 %v282, %v32
  %v299 = vadd.f32 %v283, %v32
  %v300 = vadd.f32 %v284, %v32
  %v301 = vadd.f32 %v285, %v32
  %v302 = vadd.f32 %v286, %v32
  %v303 = vadd.f32 %v287, %v32
  %v304 = vadd.f32 %v288, %v32
  %v305 = vadd.f32 %v289, %v32
  %v306 = vadd.f32 %v290, %v32
  %v307 = vadd.f32 %v291, %v32
  %v308 = vadd.f32 %v292, %v32
  %v309 = vmax.f32 %v293, 0.0
  %v310 = vmax.f32 %v294, 0.0
  %v311 = vmax.f32 %v295, 0.0
  %v312 = vmax.f32 %v296, 0.0
  %v313 = vmax.f32 %v297, 0.0
  %v314 = vmax.f32 %v298, 0.0
  %v315 = vmax.f32 %v299, 0.0
  %v316 = vmax.f32 %v300, 0.0
  %v317 = vmax.f32 %v301, 0.0
  %v318 = vmax.f32 %v302, 0.0
  %v319 = vmax.f32 %v303, 0.0
  %v320 = vmax.f32 %v304, 0.0
  %v321 = vmax.f32 %v305, 0.0
  %v322 = vmax.f32 %v306, 0.0
  %v323 = vmax.f32 %v307, 0.0
  %v324 = vmax.f32 %v308, 0.0
  %v325 = vadd.f32 %v244, %v309
  %v326 = vadd.f32 %v245, %v310
  %v327 = vadd.f32 %v246, %v311
  %v328 = vadd.f32 %v247, %v312
  %v329 = vadd.f32 %v248, %v313
  %v330 = vadd.f32 %v249, %v314
  %v331 = vadd.f32 %v250, %v315
  %v332 = vadd.f32 %v251, %v316
  %v333 = vadd.f32 %v252, %v317
  %v334 = vadd.f32 %v253, %v318
  %v335 = vadd.f32 %v254, %v319
  %v336 = vadd.f32 %v255, %v320
  %v337 = vadd.f32 %v256, %v321
  %v338 = vadd.f32 %v257, %v322
  %v339 = vadd.f32 %v258, %v323
  %v340 = vadd.f32 %v259, %v324
  %v341 = vld [vmem:[%s3] sm:$0xf]
  %v342 = vld [vmem:[%s4] sm:$0x1]
  %v344 = vlaneseq
  %v345 = vshrl.u32 %v344, 7
  %v346 = vsub.s32 0, %v345
  %v347 = vrot.slane %v342, %v346
  %vm349 = vcmask 31744
  %v351 = vsel %vm349, %v325, 0
  %v354 = vsel %vm349, %v326, 0
  %v357 = vsel %vm349, %v327, 0
  %v360 = vsel %vm349, %v328, 0
  %v363 = vsel %vm349, %v329, 0
  %v366 = vsel %vm349, %v330, 0
  %v369 = vsel %vm349, %v331, 0
  %v372 = vsel %vm349, %v332, 0
  %v375 = vsel %vm349, %v333, 0
  %v378 = vsel %vm349, %v334, 0
  %v381 = vsel %vm349, %v335, 0
  %v384 = vsel %vm349, %v336, 0
  %v387 = vsel %vm349, %v337, 0
  %v390 = vsel %vm349, %v338, 0
  %v393 = vsel %vm349, %v339, 0
  %v396 = vsel %vm349, %v340, 0
  %vm398 = vcmask 1043456
  %v400 = vsel %vm398, %v341, 0
  %402 = vmatprep.subr.mxu0 0.0
  %403 = vmatpush1.msra.mxu0 0.0
  %404 = vmatprep.subr.mxu0 0.0
  %405 = vmatpush1.msra.mxu0 0.0
  %406 = vmatprep.subr.mxu0 0.0
  %407 = vmatpush1.msra.mxu0 0.0
  %408 = vmatprep.subr.mxu0 0.0
  %409 = vmatpush1.msra.mxu0 0.0
  %410 = vmatprep.subr.mxu0 0.0
  %411 = vmatpush1.msra.mxu0 0.0
  %412 = vmatprep.subr.mxu0 0.0
  %413 = vmatpush1.msra.mxu0 0.0
  %414 = vmatprep.subr.mxu0 0.0
  %415 = vmatpush1.msra.mxu0 0.0
  %416 = vmatprep.subr.mxu0 0.0
  %417 = vmatpush1.msra.mxu0 0.0
  %418 = vmatprep.subr.mxu0 0.0
  %419 = vmatpush1.msra.mxu0 0.0
  %420 = vmatprep.subr.mxu0 0.0
  %421 = vmatpush1.msra.mxu0 0.0
  %422 = vmatprep.subr.mxu0 0.0
  %423 = vmatpush1.msra.mxu0 0.0
  %424 = vmatprep.subr.mxu0 0.0
  %425 = vmatpush1.msra.mxu0 0.0
  %426 = vmatprep.subr.mxu0 0.0
  %427 = vmatpush1.msra.mxu0 0.0
  %428 = vmatprep.subr.mxu0 0.0
  %429 = vmatpush1.msra.mxu0 0.0
  %430 = vmatprep.subr.mxu0 0.0
  %431 = vmatpush1.msra.mxu0 0.0
  %432 = vmatprep.subr.mxu0 0.0
  %433 = vmatpush1.msra.mxu0 %v400
  %434 = vmatprep.subr.mxu0 0.0
  %435 = vmatpush2.msra.mxu0 0.0
  %436 = vmatprep.subr.mxu0 0.0
  %437 = vmatpush2.msra.mxu0 0.0
  %438 = vmatprep.subr.mxu0 0.0
  %439 = vmatpush2.msra.mxu0 0.0
  %440 = vmatprep.subr.mxu0 0.0
  %441 = vmatpush2.msra.mxu0 0.0
  %442 = vmatprep.subr.mxu0 0.0
  %443 = vmatpush2.msra.mxu0 0.0
  %444 = vmatprep.subr.mxu0 0.0
  %445 = vmatpush2.msra.mxu0 0.0
  %446 = vmatprep.subr.mxu0 0.0
  %447 = vmatpush2.msra.mxu0 0.0
  %448 = vmatprep.subr.mxu0 0.0
  %449 = vmatpush2.msra.mxu0 0.0
  %450 = vmatprep.subr.mxu0 0.0
  %451 = vmatpush2.msra.mxu0 0.0
  %452 = vmatprep.subr.mxu0 0.0
  %453 = vmatpush2.msra.mxu0 0.0
  %454 = vmatprep.subr.mxu0 0.0
  %455 = vmatpush2.msra.mxu0 0.0
  %456 = vmatprep.subr.mxu0 0.0
  %457 = vmatpush2.msra.mxu0 0.0
  %458 = vmatprep.subr.mxu0 0.0
  %459 = vmatpush2.msra.mxu0 0.0
  %460 = vmatprep.subr.mxu0 0.0
  %461 = vmatpush2.msra.mxu0 0.0
  %462 = vmatprep.subr.mxu0 0.0
  %463 = vmatpush2.msra.mxu0 0.0
  %464 = vmatprep.subr.mxu0 0.0
  %465 = vmatpush2.msra.mxu0 0.0
  %466 = vmatprep.mubr.f32.mxu0 0.0
  %467 = vmatmul.mubr.f32.gmra.mxu0 %v351
  %v468 = vpop.f32.mrf.mxu0
  %v469 = vadd.f32 %v347, %v468
  %v470 = vpop.f32.mrf.mxu0
  %471 = vmatprep.mubr.f32.mxu0 0.0
  %472 = vmatmul.mubr.f32.gmra.mxu0 %v354
  %v473 = vpop.f32.mrf.mxu0
  %v474 = vadd.f32 %v347, %v473
  %v475 = vpop.f32.mrf.mxu0
  %476 = vmatprep.mubr.f32.mxu0 0.0
  %477 = vmatmul.mubr.f32.gmra.mxu0 %v357
  %v478 = vpop.f32.mrf.mxu0
  %v479 = vadd.f32 %v347, %v478
  %v480 = vpop.f32.mrf.mxu0
  %481 = vmatprep.mubr.f32.mxu0 0.0
  %482 = vmatmul.mubr.f32.gmra.mxu0 %v360
  %v483 = vpop.f32.mrf.mxu0
  %v484 = vadd.f32 %v347, %v483
  %v485 = vpop.f32.mrf.mxu0
  %486 = vmatprep.mubr.f32.mxu0 0.0
  %487 = vmatmul.mubr.f32.gmra.mxu0 %v363
  %v488 = vpop.f32.mrf.mxu0
  %v489 = vadd.f32 %v347, %v488
  %v490 = vpop.f32.mrf.mxu0
  %491 = vmatprep.mubr.f32.mxu0 0.0
  %492 = vmatmul.mubr.f32.gmra.mxu0 %v366
  %v493 = vpop.f32.mrf.mxu0
  %v494 = vadd.f32 %v347, %v493
  %v495 = vpop.f32.mrf.mxu0
  %496 = vmatprep.mubr.f32.mxu0 0.0
  %497 = vmatmul.mubr.f32.gmra.mxu0 %v369
  %v498 = vpop.f32.mrf.mxu0
  %v499 = vadd.f32 %v347, %v498
  %v500 = vpop.f32.mrf.mxu0
  %501 = vmatprep.mubr.f32.mxu0 0.0
  %502 = vmatmul.mubr.f32.gmra.mxu0 %v372
  %v503 = vpop.f32.mrf.mxu0
  %v504 = vadd.f32 %v347, %v503
  %v505 = vpop.f32.mrf.mxu0
  %506 = vmatprep.mubr.f32.mxu0 0.0
  %507 = vmatmul.mubr.f32.gmra.mxu0 %v375
  %v508 = vpop.f32.mrf.mxu0
  %v509 = vadd.f32 %v347, %v508
  %v510 = vpop.f32.mrf.mxu0
  %511 = vmatprep.mubr.f32.mxu0 0.0
  %512 = vmatmul.mubr.f32.gmra.mxu0 %v378
  %v513 = vpop.f32.mrf.mxu0
  %v514 = vadd.f32 %v347, %v513
  %v515 = vpop.f32.mrf.mxu0
  %516 = vmatprep.mubr.f32.mxu0 0.0
  %517 = vmatmul.mubr.f32.gmra.mxu0 %v381
  %v518 = vpop.f32.mrf.mxu0
  %v519 = vadd.f32 %v347, %v518
  %v520 = vpop.f32.mrf.mxu0
  %521 = vmatprep.mubr.f32.mxu0 0.0
  %522 = vmatmul.mubr.f32.gmra.mxu0 %v384
  %v523 = vpop.f32.mrf.mxu0
  %v524 = vadd.f32 %v347, %v523
  %v525 = vpop.f32.mrf.mxu0
  %526 = vmatprep.mubr.f32.mxu0 0.0
  %527 = vmatmul.mubr.f32.gmra.mxu0 %v387
  %v528 = vpop.f32.mrf.mxu0
  %v529 = vadd.f32 %v347, %v528
  %v530 = vpop.f32.mrf.mxu0
  %531 = vmatprep.mubr.f32.mxu0 0.0
  %532 = vmatmul.mubr.f32.gmra.mxu0 %v390
  %v533 = vpop.f32.mrf.mxu0
  %v534 = vadd.f32 %v347, %v533
  %v535 = vpop.f32.mrf.mxu0
  %536 = vmatprep.mubr.f32.mxu0 0.0
  %537 = vmatmul.mubr.f32.gmra.mxu0 %v393
  %v538 = vpop.f32.mrf.mxu0
  %v539 = vadd.f32 %v347, %v538
  %v540 = vpop.f32.mrf.mxu0
  %541 = vmatprep.mubr.f32.mxu0 0.0
  %542 = vmatmul.mubr.f32.gmra.mxu0 %v396
  %v543 = vpop.f32.mrf.mxu0
  %v544 = vadd.f32 %v347, %v543
  %v545 = vpop.f32.mrf.mxu0
  %546 = vdwg.mxu0
  %vm547 = vcmask 15360
  %548 = vst.msk [vmem:[%s5] sm:$0xff] %vm547, %v469
  %549 = vst.msk [vmem:[%s5 + $0x8] sm:$0xff] %vm547, %v474
  %550 = vst.msk [vmem:[%s5 + $0x10] sm:$0xff] %vm547, %v479
  %551 = vst.msk [vmem:[%s5 + $0x18] sm:$0xff] %vm547, %v484
  %552 = vst.msk [vmem:[%s5 + $0x20] sm:$0xff] %vm547, %v489
  %553 = vst.msk [vmem:[%s5 + $0x28] sm:$0xff] %vm547, %v494
  %554 = vst.msk [vmem:[%s5 + $0x30] sm:$0xff] %vm547, %v499
  %555 = vst.msk [vmem:[%s5 + $0x38] sm:$0xff] %vm547, %v504
  %556 = vst.msk [vmem:[%s5 + $0x40] sm:$0xff] %vm547, %v509
  %557 = vst.msk [vmem:[%s5 + $0x48] sm:$0xff] %vm547, %v514
  %558 = vst.msk [vmem:[%s5 + $0x50] sm:$0xff] %vm547, %v519
  %559 = vst.msk [vmem:[%s5 + $0x58] sm:$0xff] %vm547, %v524
  %560 = vst.msk [vmem:[%s5 + $0x60] sm:$0xff] %vm547, %v529
  %561 = vst.msk [vmem:[%s5 + $0x68] sm:$0xff] %vm547, %v534
  %562 = vst.msk [vmem:[%s5 + $0x70] sm:$0xff] %vm547, %v539
  %563 = vst.msk [vmem:[%s5 + $0x78] sm:$0xff] %vm547, %v544
  // Predicated region
  $region22: #{tpu_custom_call.1} parent=0 // pred_check
    _
  $region23: #{tpu_custom_call.1} parent=0 // pred_check_branch
    %565 = sbr.rel (0) target = $region25
  $region24: #{tpu_custom_call.1} parent=0 // pred_region
    _
  $region25: #{tpu_custom_call.1} parent=0 // pred_fallthru
    _
  // Predicated region
  $region26: #{tpu_custom_call.1} parent=0 // pred_check
    _
  $region27: #{tpu_custom_call.1} parent=0 // pred_check_branch
    %567 = sbr.rel (0) target = $region29
  $region28: #{tpu_custom_call.1} parent=0 // pred_region
    _
  $region29: #{tpu_custom_call.1} parent=0 // pred_fallthru
    _

</llo_original>
